<compile_context>
chip_gen: v6e
topology: v6e:2x2x1
jax: 0.10.0
libtpu: 0.0.40
codegen_flags: <defaults>
</compile_context>

<pallas_src>
import jax
import jax.numpy as jnp
from jax.experimental import pallas as pl
from jax.experimental.pallas import tpu as pltpu


# ------------------------------ Pallas kernel ------------------------------- #

def toy_cnn_fused_kernel(x_col_ref, w_conv_ref, b_conv_ref, pool_ref, w_fc_ref,
                         b_fc_ref, out_ref):
    """Fused conv (im2col matmul) + bias + ReLU + avgpool + FC.

    Shapes (all whole-array VMEM blocks, no grid):
      x_col_ref : (B*L_conv, C*K)          im2col rows, batch folded into rows
      w_conv_ref: (C*K, O)
      b_conv_ref: (1, O)
      pool_ref  : (L_pool, B, B*L_conv)    per-window averaging matrices
      w_fc_ref  : (L_pool, O, n_classes)   FC weights, PyTorch flatten order pre-folded
      b_fc_ref  : (1, n_classes)
      out_ref   : (B, n_classes)
    """
    # Conv1d for the whole batch as ONE im2col matmul on the MXU, + bias + ReLU (VPU).
    conv = jnp.dot(x_col_ref[...], w_conv_ref[...],
                   preferred_element_type=jnp.float32)              # (B*L_conv, O)
    conv = jnp.maximum(conv + b_conv_ref[...], 0.0)

    # AvgPool1d(K) + Linear, statically unrolled over the L_pool pooling windows:
    #   pool_ref[p] @ conv   -> (B, O)         window-p pooled activations, all batches
    #   ...       @ w_fc[p]  -> (B, n_classes) window-p contribution to the logits
    l_pool = pool_ref.shape[0]
    acc = jnp.zeros(out_ref.shape, jnp.float32)
    for p in range(l_pool):                                         # static, unrolled
        pooled_p = jnp.dot(pool_ref[p], conv,
                           preferred_element_type=jnp.float32)      # (B, O)
        acc = acc + jnp.dot(pooled_p, w_fc_ref[p],
                            preferred_element_type=jnp.float32)     # (B, n_classes)

    out_ref[...] = acc + b_fc_ref[...]                              # single small store


# -------------------------------- Wrapper ----------------------------------- #

def toy_cnn_forward(x, w_conv, b_conv, w_fc, b_fc, kernel_size):
    """x: (B, C, L) float32. Returns (B, n_classes) logits."""
    B, C, L = x.shape
    O = w_conv.shape[0]
    K = kernel_size
    L_conv = L - K + 1
    L_pool = L_conv // K                  # AvgPool1d default stride == kernel_size
    n_classes = w_fc.shape[0]

    # --- glue: im2col -> (B*L_conv, C*K), batch folded into matmul rows.
    # TODO(synk): at large B/L this duplicates the input K-fold in HBM; move im2col
    # in-kernel with shifted slices if it ever becomes the dominant HBM stream.
    idx = jnp.arange(L_conv)[:, None] + jnp.arange(K)[None, :]           # (L_conv, K)
    x_col = x[:, :, idx].transpose(0, 2, 1, 3).reshape(B * L_conv, C * K)

    # --- one-time parameter prep (host-side, outside the hot path) ---
    w_conv2 = w_conv.reshape(O, C * K).T                                 # (C*K, O)
    b_conv2 = b_conv.reshape(1, O)

    # Per-pool-window averaging matrices over the batch-folded conv rows:
    #   pool_all[p, b, r] = 1/K  iff  r == b*L_conv + p*K + j, j in [0, K)
    r = jnp.arange(B * L_conv)
    b_of_r = r // L_conv
    t_of_r = r % L_conv
    p_ar = jnp.arange(L_pool)[:, None, None]
    b_ar = jnp.arange(B)[None, :, None]
    pool_all = ((b_of_r[None, None, :] == b_ar)
                & (t_of_r[None, None, :] // K == p_ar)).astype(jnp.float32) / K

    # Fold PyTorch's flatten order (feature index = o*L_pool + p) into the FC weights:
    #   w_fc3[p, o, n] = w_fc[n, o*L_pool + p]
    w_fc3 = w_fc.T.reshape(O, L_pool, n_classes).transpose(1, 0, 2)      # (L_pool,O,nc)
    b_fc2 = b_fc.reshape(1, n_classes)

    vmem = pltpu.MemorySpace.VMEM
    return pl.pallas_call(
        toy_cnn_fused_kernel,
        out_shape=jax.ShapeDtypeStruct((B, n_classes), jnp.float32),
        in_specs=[pl.BlockSpec(memory_space=vmem)] * 6,
        out_specs=pl.BlockSpec(memory_space=vmem),
    )(x_col, w_conv2, b_conv2, pool_all, w_fc3, b_fc2)


# ------------------------------- Reference ----------------------------------- #

def toy_cnn_reference(x, w_conv, b_conv, w_fc, b_fc, kernel_size):
    """Plain-JAX reference implementing the exact PyTorch semantics."""
    B, C, L = x.shape
    O = w_conv.shape[0]
    K = kernel_size
    L_conv = L - K + 1
    L_pool = L_conv // K
    idx = jnp.arange(L_conv)[:, None] + jnp.arange(K)[None, :]
    x_col = x[:, :, idx].transpose(0, 2, 1, 3).reshape(B, L_conv, C * K)
    conv = jnp.einsum("btf,of->bto", x_col, w_conv.reshape(O, C * K)) + b_conv
    conv = jnp.maximum(conv, 0.0)                                    # (B, L_conv, O)
    pooled = conv[:, : L_pool * K, :].reshape(B, L_pool, K, O).mean(axis=2)
    feat = pooled.transpose(0, 2, 1).reshape(B, O * L_pool)          # torch flatten order
    return feat @ w_fc.T + b_fc


# --------------------------------- Main -------------------------------------- #

if __name__ == "__main__":
    # Module hyper-params (small, consistent with ToyCNN.__init__)
    n_channels = 4
    input_size = 32
    n_classes = 3
    kernel_size = 8
    out_channels = 10
    batch = 2

    L_conv = input_size - kernel_size + 1
    L_pool = L_conv // kernel_size
    num_features = out_channels * L_pool     # == ToyCNN._num_features analytically

    key = jax.random.PRNGKey(0)
    kx, kwc, kbc, kwf, kbf = jax.random.split(key, 5)

    x = jax.random.normal(kx, (batch, n_channels, input_size), dtype=jnp.float32)

    # Deterministic parameter init (PyTorch-style uniform(-1/sqrt(fan_in), 1/sqrt(fan_in)))
    conv_bound = 1.0 / jnp.sqrt(n_channels * kernel_size)
    w_conv = jax.random.uniform(kwc, (out_channels, n_channels, kernel_size),
                                jnp.float32, -conv_bound, conv_bound)
    b_conv = jax.random.uniform(kbc, (out_channels,), jnp.float32,
                                -conv_bound, conv_bound)
    fc_bound = 1.0 / jnp.sqrt(num_features)
    w_fc = jax.random.uniform(kwf, (n_classes, num_features), jnp.float32,
                              -fc_bound, fc_bound)
    b_fc = jax.random.uniform(kbf, (n_classes,), jnp.float32, -fc_bound, fc_bound)

    out = toy_cnn_forward(x, w_conv, b_conv, w_fc, b_fc, kernel_size)
    out = jax.block_until_ready(out)

    ref = toy_cnn_reference(x, w_conv, b_conv, w_fc, b_fc, kernel_size)
    assert out.shape == (batch, n_classes), out.shape
    assert jnp.allclose(out, ref, atol=1e-4, rtol=1e-4), (out, ref)

    print("KERNEL_OK")
</pallas_src>

<mosaic_0001>
module attributes {stable_mosaic.version = 11 : i64} {
  func.func @toy_cnn_fused_kernel(%arg0: memref<50x32xf32, #tpu.memory_space<vmem>>, %arg1: memref<32x10xf32, #tpu.memory_space<vmem>>, %arg2: memref<1x10xf32, #tpu.memory_space<vmem>>, %arg3: memref<3x2x50xf32, #tpu.memory_space<vmem>>, %arg4: memref<3x10x3xf32, #tpu.memory_space<vmem>>, %arg5: memref<1x3xf32, #tpu.memory_space<vmem>>, %arg6: memref<2x3xf32, #tpu.memory_space<vmem>>) attributes {dimension_semantics = [], scalar_prefetch = 0 : i64, scratch_operands = 0 : i64, tpu.core_type = #tpu.core_type<tc>} {
    %c0 = arith.constant 0 : index
    %c0_0 = arith.constant 0 : index
    %0 = vector.load %arg0[%c0, %c0_0] : memref<50x32xf32, #tpu.memory_space<vmem>>, vector<50x32xf32>
    %c0_1 = arith.constant 0 : index
    %c0_2 = arith.constant 0 : index
    %1 = vector.load %arg1[%c0_1, %c0_2] : memref<32x10xf32, #tpu.memory_space<vmem>>, vector<32x10xf32>
    %cst = arith.constant dense<0.000000e+00> : vector<50x10xf32>
    %2 = tpu.matmul %0, %1, %cst {dimension_numbers = #tpu.dot_dimension_numbers<[1], [0], [0], [1], [0, 0, 1, 1], [], []>} : vector<50x32xf32>, vector<32x10xf32>, vector<50x10xf32> -> vector<50x10xf32>
    %c0_3 = arith.constant 0 : index
    %c0_4 = arith.constant 0 : index
    %3 = vector.load %arg2[%c0_3, %c0_4] : memref<1x10xf32, #tpu.memory_space<vmem>>, vector<1x10xf32>
    %4 = vector.broadcast %3 : vector<1x10xf32> to vector<50x10xf32>
    %5 = arith.addf %2, %4 : vector<50x10xf32>
    %cst_5 = arith.constant 0.000000e+00 : f32
    %6 = vector.broadcast %cst_5 : f32 to vector<50x10xf32>
    %7 = arith.maximumf %5, %6 : vector<50x10xf32>
    %cst_6 = arith.constant 0.000000e+00 : f32
    %8 = vector.broadcast %cst_6 : f32 to vector<2x3xf32>
    %c0_7 = arith.constant 0 : index
    %c0_8 = arith.constant 0 : index
    %c0_9 = arith.constant 0 : index
    %9 = vector.load %arg3[%c0_7, %c0_8, %c0_9] : memref<3x2x50xf32, #tpu.memory_space<vmem>>, vector<1x2x50xf32>
    %10 = vector.shape_cast %9 : vector<1x2x50xf32> to vector<2x50xf32>
    %cst_10 = arith.constant dense<0.000000e+00> : vector<2x10xf32>
    %11 = tpu.matmul %10, %7, %cst_10 {dimension_numbers = #tpu.dot_dimension_numbers<[1], [0], [0], [1], [0, 0, 1, 1], [], []>} : vector<2x50xf32>, vector<50x10xf32>, vector<2x10xf32> -> vector<2x10xf32>
    %c0_11 = arith.constant 0 : index
    %c0_12 = arith.constant 0 : index
    %c0_13 = arith.constant 0 : index
    %12 = vector.load %arg4[%c0_11, %c0_12, %c0_13] : memref<3x10x3xf32, #tpu.memory_space<vmem>>, vector<1x10x3xf32>
    %13 = vector.shape_cast %12 : vector<1x10x3xf32> to vector<10x3xf32>
    %cst_14 = arith.constant dense<0.000000e+00> : vector<2x3xf32>
    %14 = tpu.matmul %11, %13, %cst_14 {dimension_numbers = #tpu.dot_dimension_numbers<[1], [0], [0], [1], [0, 0, 1, 1], [], []>} : vector<2x10xf32>, vector<10x3xf32>, vector<2x3xf32> -> vector<2x3xf32>
    %15 = arith.addf %8, %14 : vector<2x3xf32>
    %c1 = arith.constant 1 : index
    %c0_15 = arith.constant 0 : index
    %c0_16 = arith.constant 0 : index
    %16 = vector.load %arg3[%c1, %c0_15, %c0_16] : memref<3x2x50xf32, #tpu.memory_space<vmem>>, vector<1x2x50xf32>
    %17 = vector.shape_cast %16 : vector<1x2x50xf32> to vector<2x50xf32>
    %cst_17 = arith.constant dense<0.000000e+00> : vector<2x10xf32>
    %18 = tpu.matmul %17, %7, %cst_17 {dimension_numbers = #tpu.dot_dimension_numbers<[1], [0], [0], [1], [0, 0, 1, 1], [], []>} : vector<2x50xf32>, vector<50x10xf32>, vector<2x10xf32> -> vector<2x10xf32>
    %c1_18 = arith.constant 1 : index
    %c0_19 = arith.constant 0 : index
    %c0_20 = arith.constant 0 : index
    %19 = vector.load %arg4[%c1_18, %c0_19, %c0_20] : memref<3x10x3xf32, #tpu.memory_space<vmem>>, vector<1x10x3xf32>
    %20 = vector.shape_cast %19 : vector<1x10x3xf32> to vector<10x3xf32>
    %cst_21 = arith.constant dense<0.000000e+00> : vector<2x3xf32>
    %21 = tpu.matmul %18, %20, %cst_21 {dimension_numbers = #tpu.dot_dimension_numbers<[1], [0], [0], [1], [0, 0, 1, 1], [], []>} : vector<2x10xf32>, vector<10x3xf32>, vector<2x3xf32> -> vector<2x3xf32>
    %22 = arith.addf %15, %21 : vector<2x3xf32>
    %c2 = arith.constant 2 : index
    %c0_22 = arith.constant 0 : index
    %c0_23 = arith.constant 0 : index
    %23 = vector.load %arg3[%c2, %c0_22, %c0_23] : memref<3x2x50xf32, #tpu.memory_space<vmem>>, vector<1x2x50xf32>
    %24 = vector.shape_cast %23 : vector<1x2x50xf32> to vector<2x50xf32>
    %cst_24 = arith.constant dense<0.000000e+00> : vector<2x10xf32>
    %25 = tpu.matmul %24, %7, %cst_24 {dimension_numbers = #tpu.dot_dimension_numbers<[1], [0], [0], [1], [0, 0, 1, 1], [], []>} : vector<2x50xf32>, vector<50x10xf32>, vector<2x10xf32> -> vector<2x10xf32>
    %c2_25 = arith.constant 2 : index
    %c0_26 = arith.constant 0 : index
    %c0_27 = arith.constant 0 : index
    %26 = vector.load %arg4[%c2_25, %c0_26, %c0_27] : memref<3x10x3xf32, #tpu.memory_space<vmem>>, vector<1x10x3xf32>
    %27 = vector.shape_cast %26 : vector<1x10x3xf32> to vector<10x3xf32>
    %cst_28 = arith.constant dense<0.000000e+00> : vector<2x3xf32>
    %28 = tpu.matmul %25, %27, %cst_28 {dimension_numbers = #tpu.dot_dimension_numbers<[1], [0], [0], [1], [0, 0, 1, 1], [], []>} : vector<2x10xf32>, vector<10x3xf32>, vector<2x3xf32> -> vector<2x3xf32>
    %29 = arith.addf %22, %28 : vector<2x3xf32>
    %c0_29 = arith.constant 0 : index
    %c0_30 = arith.constant 0 : index
    %30 = vector.load %arg5[%c0_29, %c0_30] : memref<1x3xf32, #tpu.memory_space<vmem>>, vector<1x3xf32>
    %31 = vector.broadcast %30 : vector<1x3xf32> to vector<2x3xf32>
    %32 = arith.addf %29, %31 : vector<2x3xf32>
    %c0_31 = arith.constant 0 : index
    %c0_32 = arith.constant 0 : index
    %33 = vector.load %arg6[%c0_31, %c0_32] : memref<2x3xf32, #tpu.memory_space<vmem>>, vector<2x3xf32>
    tpu.vector_store %arg6[%c0_31, %c0_32], %32 {strides = array<i32>} : memref<2x3xf32, #tpu.memory_space<vmem>>, vector<2x3xf32>,
    return
  }
}

</mosaic_0001>

<llo_original>
// kernel: tpu_custom_call.1
$region0: #{tpu_custom_call.1}
  #allocation0 [shape = 'u32[]', space=smem, size = 0x4, offset = 0x4, fixed_abs, tag = 'smem constant byte address 0x4 - core index']
  #allocation1 [shape = 'u32[144,128]{1,0:T(1,128)}', space=vmem, size = 0x12000, scoped, tag = 'internal scratch']
  %s0 = inlined_call_operand.vmem [shape: f32[50,32], index: 0, kind: input, shape index: {}]
  %s1 = inlined_call_operand.vmem [shape: f32[32,10], index: 1, kind: input, shape index: {}]
  %s2 = inlined_call_operand.vmem [shape: f32[1,10], index: 2, kind: input, shape index: {}]
  %s3 = inlined_call_operand.vmem [shape: f32[3,2,50], index: 3, kind: input, shape index: {}]
  %s4 = inlined_call_operand.vmem [shape: f32[3,10,3], index: 4, kind: input, shape index: {}]
  %s5 = inlined_call_operand.vmem [shape: f32[1,3], index: 5, kind: input, shape index: {}]
  %s6 = inlined_call_operand.hbm [shape: f32[2,3], index: 6, kind: output, shape index: {}]
  %s7 = sld [smem:[#allocation0]]
  $region34: #{tpu_custom_call.1} parent=0
    _
  %s9 = ssub.s32 1, %s7
  %s10 = scalar_select 0, %s9, %s7
  $region1: #{tpu_custom_call.1} parent=0
    #allocation2 [shape = 'u8[1024]{0}', space=vmem, size = 0x400, scoped, tag = 'output window, operand 0, single buffered']
    #allocation3 [shape = 's32[1]{0}', space=sflag, size = 0x4, scoped, tag = 'scoped memory for tpu_custom_call.1']
    %11 = vsyncpa [#allocation3], 0
    // Predicated region
    $region2: #{tpu_custom_call.1} parent=1 // pred_check
      _
    $region3: #{tpu_custom_call.1} parent=1 // pred_check_branch
      %13 = sbr.rel (0) target = $region5
    $region4: #{tpu_custom_call.1} parent=1 // pred_region
      _
    $region5: #{tpu_custom_call.1} parent=1 // pred_fallthru
      _
    // Predicated region
    $region6: #{tpu_custom_call.1} parent=1 // pred_check
      _
    $region7: #{tpu_custom_call.1} parent=1 // pred_check_branch
      %15 = sbr.rel (0) target = $region9
    $region8: #{tpu_custom_call.1} parent=1 // pred_region
      _
    $region9: #{tpu_custom_call.1} parent=1 // pred_fallthru
      _
    // Predicated region
    $region10: #{tpu_custom_call.1} parent=1 // pred_check
      _
    $region11: #{tpu_custom_call.1} parent=1 // pred_check_branch
      %17 = sbr.rel (0) target = $region13
    $region12: #{tpu_custom_call.1} parent=1 // pred_region
      _
    $region13: #{tpu_custom_call.1} parent=1 // pred_fallthru
      _
    // Predicated region
    $region14: #{tpu_custom_call.1} parent=1 // pred_check
      _
    $region15: #{tpu_custom_call.1} parent=1 // pred_check_branch
      %19 = sbr.rel (0) target = $region17
    $region16: #{tpu_custom_call.1} parent=1 // pred_region
      _
    $region17: #{tpu_custom_call.1} parent=1 // pred_fallthru
      _
    // Predicated region
    $region18: #{tpu_custom_call.1} parent=1 // pred_check
      _
    $region19: #{tpu_custom_call.1} parent=1 // pred_check_branch
      %21 = sbr.rel (0) target = $region21
    $region20: #{tpu_custom_call.1} parent=1 // pred_region
      _
    $region21: #{tpu_custom_call.1} parent=1 // pred_fallthru
      _
    // Predicated region
    $region22: #{tpu_custom_call.1} parent=1 // pred_check
      _
    $region23: #{tpu_custom_call.1} parent=1 // pred_check_branch
      %23 = sbr.rel (0) target = $region25
    $region24: #{tpu_custom_call.1} parent=1 // pred_region
      _
    $region25: #{tpu_custom_call.1} parent=1 // pred_fallthru
      _
    %v24 = vld [vmem:[%s0] sm:$0xff]
    %v25 = vld [vmem:[%s0 + $0x8] sm:$0xff]
    %v26 = vld [vmem:[%s0 + $0x10] sm:$0xff]
    %v27 = vld [vmem:[%s0 + $0x18] sm:$0xff]
    %v28 = vld [vmem:[%s0 + $0x20] sm:$0xff]
    %v29 = vld [vmem:[%s0 + $0x28] sm:$0xff]
    %v30 = vld [vmem:[%s0 + $0x30] sm:$0x3]
    %v31 = vld [vmem:[%s1] sm:$0xff]
    %v32 = vld [vmem:[%s1 + $0x8] sm:$0xff]
    %v33 = vld [vmem:[%s1 + $0x10] sm:$0xff]
    %v34 = vld [vmem:[%s1 + $0x18] sm:$0xff]
    %v35 = vld [vmem:[%s2] sm:$0x1]
    %v37 = vlaneseq
    %v38 = vshrl.u32 %v37, 7
    %v39 = vsub.s32 0, %v38
    %v40 = vrot.slane %v35, %v39
    %vm42 = vcmask 261120
    %v44 = vsel %vm42, %v24, 0
    %v47 = vsel %vm42, %v25, 0
    %v50 = vsel %vm42, %v26, 0
    %v53 = vsel %vm42, %v27, 0
    %v56 = vsel %vm42, %v28, 0
    %v59 = vsel %vm42, %v29, 0
    %v62 = vsel %vm42, %v30, 0
    %64 = vmatprep.subr.mxu0 0.0
    %65 = vmatpush1.msra.mxu0 0.0
    %66 = vmatprep.subr.mxu0 0.0
    %67 = vmatpush1.msra.mxu0 0.0
    %68 = vmatprep.subr.mxu0 0.0
    %69 = vmatpush1.msra.mxu0 0.0
    %70 = vmatprep.subr.mxu0 0.0
    %71 = vmatpush1.msra.mxu0 0.0
    %72 = vmatprep.subr.mxu0 0.0
    %73 = vmatpush1.msra.mxu0 0.0
    %74 = vmatprep.subr.mxu0 0.0
    %75 = vmatpush1.msra.mxu0 0.0
    %76 = vmatprep.subr.mxu0 0.0
    %77 = vmatpush1.msra.mxu0 0.0
    %78 = vmatprep.subr.mxu0 0.0
    %79 = vmatpush1.msra.mxu0 0.0
    %80 = vmatprep.subr.mxu0 0.0
    %81 = vmatpush1.msra.mxu0 0.0
    %82 = vmatprep.subr.mxu0 0.0
    %83 = vmatpush1.msra.mxu0 0.0
    %84 = vmatprep.subr.mxu0 0.0
    %85 = vmatpush1.msra.mxu0 0.0
    %86 = vmatprep.subr.mxu0 0.0
    %87 = vmatpush1.msra.mxu0 0.0
    %88 = vmatprep.subr.mxu0 0.0
    %89 = vmatpush1.msra.mxu0 %v34
    %90 = vmatprep.subr.mxu0 0.0
    %91 = vmatpush1.msra.mxu0 %v33
    %92 = vmatprep.subr.mxu0 0.0
    %93 = vmatpush1.msra.mxu0 %v32
    %94 = vmatprep.subr.mxu0 0.0
    %95 = vmatpush1.msra.mxu0 %v31
    %96 = vmatprep.subr.mxu0 0.0
    %97 = vmatpush2.msra.mxu0 0.0
    %98 = vmatprep.subr.mxu0 0.0
    %99 = vmatpush2.msra.mxu0 0.0
    %100 = vmatprep.subr.mxu0 0.0
    %101 = vmatpush2.msra.mxu0 0.0
    %102 = vmatprep.subr.mxu0 0.0
    %103 = vmatpush2.msra.mxu0 0.0
    %104 = vmatprep.subr.mxu0 0.0
    %105 = vmatpush2.msra.mxu0 0.0
    %106 = vmatprep.subr.mxu0 0.0
    %107 = vmatpush2.msra.mxu0 0.0
    %108 = vmatprep.subr.mxu0 0.0
    %109 = vmatpush2.msra.mxu0 0.0
    %110 = vmatprep.subr.mxu0 0.0
    %111 = vmatpush2.msra.mxu0 0.0
    %112 = vmatprep.subr.mxu0 0.0
    %113 = vmatpush2.msra.mxu0 0.0
    %114 = vmatprep.subr.mxu0 0.0
    %115 = vmatpush2.msra.mxu0 0.0
    %116 = vmatprep.subr.mxu0 0.0
    %117 = vmatpush2.msra.mxu0 0.0
    %118 = vmatprep.subr.mxu0 0.0
    %119 = vmatpush2.msra.mxu0 0.0
    %120 = vmatprep.subr.mxu0 0.0
    %121 = vmatpush2.msra.mxu0 0.0
    %122 = vmatprep.subr.mxu0 0.0
    %123 = vmatpush2.msra.mxu0 0.0
    %124 = vmatprep.subr.mxu0 0.0
    %125 = vmatpush2.msra.mxu0 0.0
    %126 = vmatprep.subr.mxu0 0.0
    %127 = vmatpush2.msra.mxu0 0.0
    %128 = vmatprep.mubr.f32.mxu0 0.0
    %129 = vmatmul.mubr.f32.gmra.mxu0 %v44
    %v130 = vpop.f32.mrf.mxu0
    %v131 = vadd.f32 %v40, %v130
    %v132 = vpop.f32.mrf.mxu0
    %133 = vmatprep.mubr.f32.mxu0 0.0
    %134 = vmatmul.mubr.f32.gmra.mxu0 %v47
    %v135 = vpop.f32.mrf.mxu0
    %v136 = vadd.f32 %v40, %v135
    %v137 = vpop.f32.mrf.mxu0
    %138 = vmatprep.mubr.f32.mxu0 0.0
    %139 = vmatmul.mubr.f32.gmra.mxu0 %v50
    %v140 = vpop.f32.mrf.mxu0
    %v141 = vadd.f32 %v40, %v140
    %v142 = vpop.f32.mrf.mxu0
    %143 = vmatprep.mubr.f32.mxu0 0.0
    %144 = vmatmul.mubr.f32.gmra.mxu0 %v53
    %v145 = vpop.f32.mrf.mxu0
    %v146 = vadd.f32 %v40, %v145
    %v147 = vpop.f32.mrf.mxu0
    %148 = vmatprep.mubr.f32.mxu0 0.0
    %149 = vmatmul.mubr.f32.gmra.mxu0 %v56
    %v150 = vpop.f32.mrf.mxu0
    %v151 = vadd.f32 %v40, %v150
    %v152 = vpop.f32.mrf.mxu0
    %153 = vmatprep.mubr.f32.mxu0 0.0
    %154 = vmatmul.mubr.f32.gmra.mxu0 %v59
    %v155 = vpop.f32.mrf.mxu0
    %v156 = vadd.f32 %v40, %v155
    %v157 = vpop.f32.mrf.mxu0
    %158 = vmatprep.mubr.f32.mxu0 0.0
    %159 = vmatmul.mubr.f32.gmra.mxu0 %v62
    %v160 = vpop.f32.mrf.mxu0
    %v161 = vadd.f32 %v40, %v160
    %v162 = vpop.f32.mrf.mxu0
    %163 = vdwg.mxu0
    %v164 = vmax.f32 %v131, 0.0
    %v165 = vmax.f32 %v136, 0.0
    %v166 = vmax.f32 %v141, 0.0
    %v167 = vmax.f32 %v146, 0.0
    %v168 = vmax.f32 %v151, 0.0
    %v169 = vmax.f32 %v156, 0.0
    %v170 = vmax.f32 %v161, 0.0
    %v171 = vld [vmem:[%s3] sm:$0x3]
    %vm172 = vcmask 408576
    %v174 = vsel %vm172, %v171, 0
    %vm176 = vcmask 1041408
    %v178 = vsel %vm176, %v170, 0
    %180 = vmatprep.subr.mxu0 0.0
    %181 = vmatpush1.msra.mxu0 0.0
    %182 = vmatprep.subr.mxu0 0.0
    %183 = vmatpush1.msra.mxu0 0.0
    %184 = vmatprep.subr.mxu0 0.0
    %185 = vmatpush1.msra.mxu0 0.0
    %186 = vmatprep.subr.mxu0 0.0
    %187 = vmatpush1.msra.mxu0 0.0
    %188 = vmatprep.subr.mxu0 0.0
    %189 = vmatpush1.msra.mxu0 0.0
    %190 = vmatprep.subr.mxu0 0.0
    %191 = vmatpush1.msra.mxu0 0.0
    %192 = vmatprep.subr.mxu0 0.0
    %193 = vmatpush1.msra.mxu0 0.0
    %194 = vmatprep.subr.mxu0 0.0
    %195 = vmatpush1.msra.mxu0 0.0
    %196 = vmatprep.subr.mxu0 0.0
    %197 = vmatpush1.msra.mxu0 0.0
    %198 = vmatprep.subr.mxu0 0.0
    %199 = vmatpush1.msra.mxu0 %v178
    %200 = vmatprep.subr.mxu0 0.0
    %201 = vmatpush1.msra.mxu0 %v169
    %202 = vmatprep.subr.mxu0 0.0
    %203 = vmatpush1.msra.mxu0 %v168
    %204 = vmatprep.subr.mxu0 0.0
    %205 = vmatpush1.msra.mxu0 %v167
    %206 = vmatprep.subr.mxu0 0.0
    %207 = vmatpush1.msra.mxu0 %v166
    %208 = vmatprep.subr.mxu0 0.0
    %209 = vmatpush1.msra.mxu0 %v165
    %210 = vmatprep.subr.mxu0 0.0
    %211 = vmatpush1.msra.mxu0 %v164
    %212 = vmatprep.subr.mxu0 0.0
    %213 = vmatpush2.msra.mxu0 0.0
    %214 = vmatprep.subr.mxu0 0.0
    %215 = vmatpush2.msra.mxu0 0.0
    %216 = vmatprep.subr.mxu0 0.0
    %217 = vmatpush2.msra.mxu0 0.0
    %218 = vmatprep.subr.mxu0 0.0
    %219 = vmatpush2.msra.mxu0 0.0
    %220 = vmatprep.subr.mxu0 0.0
    %221 = vmatpush2.msra.mxu0 0.0
    %222 = vmatprep.subr.mxu0 0.0
    %223 = vmatpush2.msra.mxu0 0.0
    %224 = vmatprep.subr.mxu0 0.0
    %225 = vmatpush2.msra.mxu0 0.0
    %226 = vmatprep.subr.mxu0 0.0
    %227 = vmatpush2.msra.mxu0 0.0
    %228 = vmatprep.subr.mxu0 0.0
    %229 = vmatpush2.msra.mxu0 0.0
    %230 = vmatprep.subr.mxu0 0.0
    %231 = vmatpush2.msra.mxu0 0.0
    %232 = vmatprep.subr.mxu0 0.0
    %233 = vmatpush2.msra.mxu0 0.0
    %234 = vmatprep.subr.mxu0 0.0
    %235 = vmatpush2.msra.mxu0 0.0
    %236 = vmatprep.subr.mxu0 0.0
    %237 = vmatpush2.msra.mxu0 0.0
    %238 = vmatprep.subr.mxu0 0.0
    %239 = vmatpush2.msra.mxu0 0.0
    %240 = vmatprep.subr.mxu0 0.0
    %241 = vmatpush2.msra.mxu0 0.0
    %242 = vmatprep.subr.mxu0 0.0
    %243 = vmatpush2.msra.mxu0 0.0
    %244 = vmatprep.mubr.f32.mxu0 0.0
    %245 = vmatmul.mubr.f32.gmra.mxu0 %v174
    %v246 = vpop.f32.mrf.mxu0
    %v247 = vadd.f32 0.0, %v246
    %v248 = vpop.f32.mrf.mxu0
    %249 = vdwg.mxu0
    %v250 = vld [vmem:[%s4] sm:$0xff]
    %v251 = vld [vmem:[%s4 + $0x8] sm:$0x3]
    %s252 = scalar_lea.vmem %s3, 2
    %v253 = vld [vmem:[%s252] sm:$0x3]
    %v255 = vsel %vm172, %v253, 0
    %257 = vmatprep.subr.mxu0 0.0
    %258 = vmatpush1.msra.mxu0 0.0
    %259 = vmatprep.subr.mxu0 0.0
    %260 = vmatpush1.msra.mxu0 0.0
    %261 = vmatprep.subr.mxu0 0.0
    %262 = vmatpush1.msra.mxu0 0.0
    %263 = vmatprep.subr.mxu0 0.0
    %264 = vmatpush1.msra.mxu0 0.0
    %265 = vmatprep.subr.mxu0 0.0
    %266 = vmatpush1.msra.mxu0 0.0
    %267 = vmatprep.subr.mxu0 0.0
    %268 = vmatpush1.msra.mxu0 0.0
    %269 = vmatprep.subr.mxu0 0.0
    %270 = vmatpush1.msra.mxu0 0.0
    %271 = vmatprep.subr.mxu0 0.0
    %272 = vmatpush1.msra.mxu0 0.0
    %273 = vmatprep.subr.mxu0 0.0
    %274 = vmatpush1.msra.mxu0 0.0
    %275 = vmatprep.subr.mxu0 0.0
    %276 = vmatpush1.msra.mxu0 %v178
    %277 = vmatprep.subr.mxu0 0.0
    %278 = vmatpush1.msra.mxu0 %v169
    %279 = vmatprep.subr.mxu0 0.0
    %280 = vmatpush1.msra.mxu0 %v168
    %281 = vmatprep.subr.mxu0 0.0
    %282 = vmatpush1.msra.mxu0 %v167
    %283 = vmatprep.subr.mxu0 0.0
    %284 = vmatpush1.msra.mxu0 %v166
    %285 = vmatprep.subr.mxu0 0.0
    %286 = vmatpush1.msra.mxu0 %v165
    %287 = vmatprep.subr.mxu0 0.0
    %288 = vmatpush1.msra.mxu0 %v164
    %289 = vmatprep.subr.mxu0 0.0
    %290 = vmatpush2.msra.mxu0 0.0
    %291 = vmatprep.subr.mxu0 0.0
    %292 = vmatpush2.msra.mxu0 0.0
    %293 = vmatprep.subr.mxu0 0.0
    %294 = vmatpush2.msra.mxu0 0.0
    %295 = vmatprep.subr.mxu0 0.0
    %296 = vmatpush2.msra.mxu0 0.0
    %297 = vmatprep.subr.mxu0 0.0
    %298 = vmatpush2.msra.mxu0 0.0
    %299 = vmatprep.subr.mxu0 0.0
    %300 = vmatpush2.msra.mxu0 0.0
    %301 = vmatprep.subr.mxu0 0.0
    %302 = vmatpush2.msra.mxu0 0.0
    %303 = vmatprep.subr.mxu0 0.0
    %304 = vmatpush2.msra.mxu0 0.0
    %305 = vmatprep.subr.mxu0 0.0
    %306 = vmatpush2.msra.mxu0 0.0
    %307 = vmatprep.subr.mxu0 0.0
    %308 = vmatpush2.msra.mxu0 0.0
    %309 = vmatprep.subr.mxu0 0.0
    %310 = vmatpush2.msra.mxu0 0.0
    %311 = vmatprep.subr.mxu0 0.0
    %312 = vmatpush2.msra.mxu0 0.0
    %313 = vmatprep.subr.mxu0 0.0
    %314 = vmatpush2.msra.mxu0 0.0
    %315 = vmatprep.subr.mxu0 0.0
    %316 = vmatpush2.msra.mxu0 0.0
    %317 = vmatprep.subr.mxu0 0.0
    %318 = vmatpush2.msra.mxu0 0.0
    %319 = vmatprep.subr.mxu0 0.0
    %320 = vmatpush2.msra.mxu0 0.0
    %321 = vmatprep.mubr.f32.mxu0 0.0
    %322 = vmatmul.mubr.f32.gmra.mxu0 %v255
    %v323 = vpop.f32.mrf.mxu0
    %v324 = vadd.f32 0.0, %v323
    %v325 = vpop.f32.mrf.mxu0
    %326 = vdwg.mxu0
    %s327 = scalar_lea.vmem %s4, 16
    %v328 = vld [vmem:[%s327] sm:$0xff]
    %v329 = vld [vmem:[%s327 + $0x8] sm:$0x3]
    %vm330 = vcmask 80896
    %v332 = vsel %vm330, %v324, 0
    %v335 = vsel %vm176, %v329, 0
    %337 = vmatprep.subr.mxu0 0.0
    %338 = vmatpush1.msra.mxu0 0.0
    %339 = vmatprep.subr.mxu0 0.0
    %340 = vmatpush1.msra.mxu0 0.0
    %341 = vmatprep.subr.mxu0 0.0
    %342 = vmatpush1.msra.mxu0 0.0
    %343 = vmatprep.subr.mxu0 0.0
    %344 = vmatpush1.msra.mxu0 0.0
    %345 = vmatprep.subr.mxu0 0.0
    %346 = vmatpush1.msra.mxu0 0.0
    %347 = vmatprep.subr.mxu0 0.0
    %348 = vmatpush1.msra.mxu0 0.0
    %349 = vmatprep.subr.mxu0 0.0
    %350 = vmatpush1.msra.mxu0 0.0
    %351 = vmatprep.subr.mxu0 0.0
    %352 = vmatpush1.msra.mxu0 0.0
    %353 = vmatprep.subr.mxu0 0.0
    %354 = vmatpush1.msra.mxu0 0.0
    %355 = vmatprep.subr.mxu0 0.0
    %356 = vmatpush1.msra.mxu0 0.0
    %357 = vmatprep.subr.mxu0 0.0
    %358 = vmatpush1.msra.mxu0 0.0
    %359 = vmatprep.subr.mxu0 0.0
    %360 = vmatpush1.msra.mxu0 0.0
    %361 = vmatprep.subr.mxu0 0.0
    %362 = vmatpush1.msra.mxu0 0.0
    %363 = vmatprep.subr.mxu0 0.0
    %364 = vmatpush1.msra.mxu0 0.0
    %365 = vmatprep.subr.mxu0 0.0
    %366 = vmatpush1.msra.mxu0 %v335
    %367 = vmatprep.subr.mxu0 0.0
    %368 = vmatpush1.msra.mxu0 %v328
    %369 = vmatprep.subr.mxu0 0.0
    %370 = vmatpush2.msra.mxu0 0.0
    %371 = vmatprep.subr.mxu0 0.0
    %372 = vmatpush2.msra.mxu0 0.0
    %373 = vmatprep.subr.mxu0 0.0
    %374 = vmatpush2.msra.mxu0 0.0
    %375 = vmatprep.subr.mxu0 0.0
    %376 = vmatpush2.msra.mxu0 0.0
    %377 = vmatprep.subr.mxu0 0.0
    %378 = vmatpush2.msra.mxu0 0.0
    %379 = vmatprep.subr.mxu0 0.0
    %380 = vmatpush2.msra.mxu0 0.0
    %381 = vmatprep.subr.mxu0 0.0
    %382 = vmatpush2.msra.mxu0 0.0
    %383 = vmatprep.subr.mxu0 0.0
    %384 = vmatpush2.msra.mxu0 0.0
    %385 = vmatprep.subr.mxu0 0.0
    %386 = vmatpush2.msra.mxu0 0.0
    %387 = vmatprep.subr.mxu0 0.0
    %388 = vmatpush2.msra.mxu0 0.0
    %389 = vmatprep.subr.mxu0 0.0
    %390 = vmatpush2.msra.mxu0 0.0
    %391 = vmatprep.subr.mxu0 0.0
    %392 = vmatpush2.msra.mxu0 0.0
    %393 = vmatprep.subr.mxu0 0.0
    %394 = vmatpush2.msra.mxu0 0.0
    %395 = vmatprep.subr.mxu0 0.0
    %396 = vmatpush2.msra.mxu0 0.0
    %397 = vmatprep.subr.mxu0 0.0
    %398 = vmatpush2.msra.mxu0 0.0
    %399 = vmatprep.subr.mxu0 0.0
    %400 = vmatpush2.msra.mxu0 0.0
    %401 = vmatprep.mubr.f32.mxu0 0.0
    %402 = vmatmul.mubr.f32.gmra.mxu0 %v332
    %v403 = vpop.f32.mrf.mxu0
    %v404 = vadd.f32 0.0, %v403
    %v405 = vpop.f32.mrf.mxu0
    %406 = vdwg.mxu0
    %v408 = vsel %vm330, %v247, 0
    %v411 = vsel %vm176, %v251, 0
    %413 = vmatprep.subr.mxu0 0.0
    %414 = vmatpush1.msra.mxu0 0.0
    %415 = vmatprep.subr.mxu0 0.0
    %416 = vmatpush1.msra.mxu0 0.0
    %417 = vmatprep.subr.mxu0 0.0
    %418 = vmatpush1.msra.mxu0 0.0
    %419 = vmatprep.subr.mxu0 0.0
    %420 = vmatpush1.msra.mxu0 0.0
    %421 = vmatprep.subr.mxu0 0.0
    %422 = vmatpush1.msra.mxu0 0.0
    %423 = vmatprep.subr.mxu0 0.0
    %424 = vmatpush1.msra.mxu0 0.0
    %425 = vmatprep.subr.mxu0 0.0
    %426 = vmatpush1.msra.mxu0 0.0
    %427 = vmatprep.subr.mxu0 0.0
    %428 = vmatpush1.msra.mxu0 0.0
    %429 = vmatprep.subr.mxu0 0.0
    %430 = vmatpush1.msra.mxu0 0.0
    %431 = vmatprep.subr.mxu0 0.0
    %432 = vmatpush1.msra.mxu0 0.0
    %433 = vmatprep.subr.mxu0 0.0
    %434 = vmatpush1.msra.mxu0 0.0
    %435 = vmatprep.subr.mxu0 0.0
    %436 = vmatpush1.msra.mxu0 0.0
    %437 = vmatprep.subr.mxu0 0.0
    %438 = vmatpush1.msra.mxu0 0.0
    %439 = vmatprep.subr.mxu0 0.0
    %440 = vmatpush1.msra.mxu0 0.0
    %441 = vmatprep.subr.mxu0 0.0
    %442 = vmatpush1.msra.mxu0 %v411
    %443 = vmatprep.subr.mxu0 0.0
    %444 = vmatpush1.msra.mxu0 %v250
    %445 = vmatprep.subr.mxu0 0.0
    %446 = vmatpush2.msra.mxu0 0.0
    %447 = vmatprep.subr.mxu0 0.0
    %448 = vmatpush2.msra.mxu0 0.0
    %449 = vmatprep.subr.mxu0 0.0
    %450 = vmatpush2.msra.mxu0 0.0
    %451 = vmatprep.subr.mxu0 0.0
    %452 = vmatpush2.msra.mxu0 0.0
    %453 = vmatprep.subr.mxu0 0.0
    %454 = vmatpush2.msra.mxu0 0.0
    %455 = vmatprep.subr.mxu0 0.0
    %456 = vmatpush2.msra.mxu0 0.0
    %457 = vmatprep.subr.mxu0 0.0
    %458 = vmatpush2.msra.mxu0 0.0
    %459 = vmatprep.subr.mxu0 0.0
    %460 = vmatpush2.msra.mxu0 0.0
    %461 = vmatprep.subr.mxu0 0.0
    %462 = vmatpush2.msra.mxu0 0.0
    %463 = vmatprep.subr.mxu0 0.0
    %464 = vmatpush2.msra.mxu0 0.0
    %465 = vmatprep.subr.mxu0 0.0
    %466 = vmatpush2.msra.mxu0 0.0
    %467 = vmatprep.subr.mxu0 0.0
    %468 = vmatpush2.msra.mxu0 0.0
    %469 = vmatprep.subr.mxu0 0.0
    %470 = vmatpush2.msra.mxu0 0.0
    %471 = vmatprep.subr.mxu0 0.0
    %472 = vmatpush2.msra.mxu0 0.0
    %473 = vmatprep.subr.mxu0 0.0
    %474 = vmatpush2.msra.mxu0 0.0
    %475 = vmatprep.subr.mxu0 0.0
    %476 = vmatpush2.msra.mxu0 0.0
    %477 = vmatprep.mubr.f32.mxu0 0.0
    %478 = vmatmul.mubr.f32.gmra.mxu0 %v408
    %v479 = vpop.f32.mrf.mxu0
    %v480 = vadd.f32 %v404, %v479
    %v481 = vpop.f32.mrf.mxu0
    %482 = vdwg.mxu0
    %s483 = scalar_lea.vmem %s3, 4
    %v484 = vld [vmem:[%s483] sm:$0x3]
    %v486 = vsel %vm172, %v484, 0
    %488 = vmatprep.subr.mxu0 0.0
    %489 = vmatpush1.msra.mxu0 0.0
    %490 = vmatprep.subr.mxu0 0.0
    %491 = vmatpush1.msra.mxu0 0.0
    %492 = vmatprep.subr.mxu0 0.0
    %493 = vmatpush1.msra.mxu0 0.0
    %494 = vmatprep.subr.mxu0 0.0
    %495 = vmatpush1.msra.mxu0 0.0
    %496 = vmatprep.subr.mxu0 0.0
    %497 = vmatpush1.msra.mxu0 0.0
    %498 = vmatprep.subr.mxu0 0.0
    %499 = vmatpush1.msra.mxu0 0.0
    %500 = vmatprep.subr.mxu0 0.0
    %501 = vmatpush1.msra.mxu0 0.0
    %502 = vmatprep.subr.mxu0 0.0
    %503 = vmatpush1.msra.mxu0 0.0
    %504 = vmatprep.subr.mxu0 0.0
    %505 = vmatpush1.msra.mxu0 0.0
    %506 = vmatprep.subr.mxu0 0.0
    %507 = vmatpush1.msra.mxu0 %v178
    %508 = vmatprep.subr.mxu0 0.0
    %509 = vmatpush1.msra.mxu0 %v169
    %510 = vmatprep.subr.mxu0 0.0
    %511 = vmatpush1.msra.mxu0 %v168
    %512 = vmatprep.subr.mxu0 0.0
    %513 = vmatpush1.msra.mxu0 %v167
    %514 = vmatprep.subr.mxu0 0.0
    %515 = vmatpush1.msra.mxu0 %v166
    %516 = vmatprep.subr.mxu0 0.0
    %517 = vmatpush1.msra.mxu0 %v165
    %518 = vmatprep.subr.mxu0 0.0
    %519 = vmatpush1.msra.mxu0 %v164
    %520 = vmatprep.subr.mxu0 0.0
    %521 = vmatpush2.msra.mxu0 0.0
    %522 = vmatprep.subr.mxu0 0.0
    %523 = vmatpush2.msra.mxu0 0.0
    %524 = vmatprep.subr.mxu0 0.0
    %525 = vmatpush2.msra.mxu0 0.0
    %526 = vmatprep.subr.mxu0 0.0
    %527 = vmatpush2.msra.mxu0 0.0
    %528 = vmatprep.subr.mxu0 0.0
    %529 = vmatpush2.msra.mxu0 0.0
    %530 = vmatprep.subr.mxu0 0.0
    %531 = vmatpush2.msra.mxu0 0.0
    %532 = vmatprep.subr.mxu0 0.0
    %533 = vmatpush2.msra.mxu0 0.0
    %534 = vmatprep.subr.mxu0 0.0
    %535 = vmatpush2.msra.mxu0 0.0
    %536 = vmatprep.subr.mxu0 0.0
    %537 = vmatpush2.msra.mxu0 0.0
    %538 = vmatprep.subr.mxu0 0.0
    %539 = vmatpush2.msra.mxu0 0.0
    %540 = vmatprep.subr.mxu0 0.0
    %541 = vmatpush2.msra.mxu0 0.0
    %542 = vmatprep.subr.mxu0 0.0
    %543 = vmatpush2.msra.mxu0 0.0
    %544 = vmatprep.subr.mxu0 0.0
    %545 = vmatpush2.msra.mxu0 0.0
    %546 = vmatprep.subr.mxu0 0.0
    %547 = vmatpush2.msra.mxu0 0.0
    %548 = vmatprep.subr.mxu0 0.0
    %549 = vmatpush2.msra.mxu0 0.0
    %550 = vmatprep.subr.mxu0 0.0
    %551 = vmatpush2.msra.mxu0 0.0
    %552 = vmatprep.mubr.f32.mxu0 0.0
    %553 = vmatmul.mubr.f32.gmra.mxu0 %v486
    %v554 = vpop.f32.mrf.mxu0
    %v555 = vadd.f32 0.0, %v554
    %v556 = vpop.f32.mrf.mxu0
    %557 = vdwg.mxu0
    %s558 = scalar_lea.vmem %s4, 32
    %v559 = vld [vmem:[%s558] sm:$0xff]
    %v560 = vld [vmem:[%s558 + $0x8] sm:$0x3]
    %v562 = vsel %vm330, %v555, 0
    %v565 = vsel %vm176, %v560, 0
    %567 = vmatprep.subr.mxu0 0.0
    %568 = vmatpush1.msra.mxu0 0.0
    %569 = vmatprep.subr.mxu0 0.0
    %570 = vmatpush1.msra.mxu0 0.0
    %571 = vmatprep.subr.mxu0 0.0
    %572 = vmatpush1.msra.mxu0 0.0
    %573 = vmatprep.subr.mxu0 0.0
    %574 = vmatpush1.msra.mxu0 0.0
    %575 = vmatprep.subr.mxu0 0.0
    %576 = vmatpush1.msra.mxu0 0.0
    %577 = vmatprep.subr.mxu0 0.0
    %578 = vmatpush1.msra.mxu0 0.0
    %579 = vmatprep.subr.mxu0 0.0
    %580 = vmatpush1.msra.mxu0 0.0
    %581 = vmatprep.subr.mxu0 0.0
    %582 = vmatpush1.msra.mxu0 0.0
    %583 = vmatprep.subr.mxu0 0.0
    %584 = vmatpush1.msra.mxu0 0.0
    %585 = vmatprep.subr.mxu0 0.0
    %586 = vmatpush1.msra.mxu0 0.0
    %587 = vmatprep.subr.mxu0 0.0
    %588 = vmatpush1.msra.mxu0 0.0
    %589 = vmatprep.subr.mxu0 0.0
    %590 = vmatpush1.msra.mxu0 0.0
    %591 = vmatprep.subr.mxu0 0.0
    %592 = vmatpush1.msra.mxu0 0.0
    %593 = vmatprep.subr.mxu0 0.0
    %594 = vmatpush1.msra.mxu0 0.0
    %595 = vmatprep.subr.mxu0 0.0
    %596 = vmatpush1.msra.mxu0 %v565
    %597 = vmatprep.subr.mxu0 0.0
    %598 = vmatpush1.msra.mxu0 %v559
    %599 = vmatprep.subr.mxu0 0.0
    %600 = vmatpush2.msra.mxu0 0.0
    %601 = vmatprep.subr.mxu0 0.0
    %602 = vmatpush2.msra.mxu0 0.0
    %603 = vmatprep.subr.mxu0 0.0
    %604 = vmatpush2.msra.mxu0 0.0
    %605 = vmatprep.subr.mxu0 0.0
    %606 = vmatpush2.msra.mxu0 0.0
    %607 = vmatprep.subr.mxu0 0.0
    %608 = vmatpush2.msra.mxu0 0.0
    %609 = vmatprep.subr.mxu0 0.0
    %610 = vmatpush2.msra.mxu0 0.0
    %611 = vmatprep.subr.mxu0 0.0
    %612 = vmatpush2.msra.mxu0 0.0
    %613 = vmatprep.subr.mxu0 0.0
    %614 = vmatpush2.msra.mxu0 0.0
    %615 = vmatprep.subr.mxu0 0.0
    %616 = vmatpush2.msra.mxu0 0.0
    %617 = vmatprep.subr.mxu0 0.0
    %618 = vmatpush2.msra.mxu0 0.0
    %619 = vmatprep.subr.mxu0 0.0
    %620 = vmatpush2.msra.mxu0 0.0
    %621 = vmatprep.subr.mxu0 0.0
    %622 = vmatpush2.msra.mxu0 0.0
    %623 = vmatprep.subr.mxu0 0.0
    %624 = vmatpush2.msra.mxu0 0.0
    %625 = vmatprep.subr.mxu0 0.0
    %626 = vmatpush2.msra.mxu0 0.0
    %627 = vmatprep.subr.mxu0 0.0
    %628 = vmatpush2.msra.mxu0 0.0
    %629 = vmatprep.subr.mxu0 0.0
    %630 = vmatpush2.msra.mxu0 0.0
    %631 = vmatprep.mubr.f32.mxu0 0.0
    %632 = vmatmul.mubr.f32.gmra.mxu0 %v562
    %v633 = vpop.f32.mrf.mxu0
    %v634 = vadd.f32 0.0, %v633
    %v635 = vpop.f32.mrf.mxu0
    %636 = vdwg.mxu0
    %v637 = vadd.f32 %v480, %v634
    %v638 = vld [vmem:[%s5] sm:$0x1]
    %v640 = vlaneseq
    %v641 = vshrl.u32 %v640, 7
    %v642 = vsub.s32 0, %v641
    %v643 = vrot.slane %v638, %v642
    %v645 = vadd.f32 %v637, %v643
    %vm646 = vcmask 17408
    %647 = vst.msk [vmem:[#allocation2] sm:$0x3] %vm646, %v645
    // Predicated region
    $region26: #{tpu_custom_call.1} parent=1 // pred_check
      _
    $region27: #{tpu_custom_call.1} parent=1 // pred_check_branch
      %649 = sbr.rel (0) target = $region29
    $region28: #{tpu_custom_call.1} parent=1 // pred_region
      %s651 = ssub.s32 32, 32
      %652 = vsyncadd [#allocation3], %s651
      %s654 = sshll.u32 [#allocation2], 4
      %s655 = int_to_ptr.vmem [resolvable:$true] %s654
      %657 = dma.vmem_to_hbm [thread:$0]  %s655, 32, %s6, [#allocation3]
    $region29: #{tpu_custom_call.1} parent=1 // pred_fallthru
      _
    // Predicated region
    $region30: #{tpu_custom_call.1} parent=1 // pred_check
      _
    $region31: #{tpu_custom_call.1} parent=1 // pred_check_branch
      %659 = sbr.rel (0) target = $region33
    $region32: #{tpu_custom_call.1} parent=1 // pred_region
      %660 = dma.done [#allocation3], 32
    $region33: #{tpu_custom_call.1} parent=1 // pred_fallthru
      _
    %661 = vsyncpa [#allocation3], 1

</llo_original>
